<compile_context>
chip_gen: v6e
topology: v6e:2x2x1
jax: 0.10.0
libtpu: 0.0.40
codegen_flags: <defaults>
</compile_context>

<pallas_src>
import numpy as np
import jax
import jax.numpy as jnp
from jax import lax
from jax.experimental import pallas as pl
from jax.experimental.pallas import tpu as pltpu

CHANNELS = 3  # the module hard-codes Conv2d(3, 3, ...)


def _gaussian_kernel_2d(kernel_size, std, truncate=4.0):
    """scipy.ndimage.gaussian_filter applied to a centered delta (order=0,
    mode='reflect'), reproduced in numpy -> the module's weights_init()."""
    radius = int(truncate * std + 0.5)
    x = np.arange(-radius, radius + 1, dtype=np.float64)
    phi = np.exp(-0.5 * (x / std) ** 2)
    phi /= phi.sum()
    n = np.zeros((kernel_size, kernel_size), dtype=np.float64)
    n[kernel_size // 2, kernel_size // 2] = 1.0

    def corr1d(a, w, axis):
        r = len(w) // 2
        pads = [(r, r) if ax == axis else (0, 0) for ax in range(a.ndim)]
        ap = np.pad(a, pads, mode="symmetric")  # == scipy 'reflect'
        out = np.zeros_like(a)
        for i in range(len(w)):
            sl = [slice(None)] * a.ndim
            sl[axis] = slice(i, i + a.shape[axis])
            out = out + w[i] * ap[tuple(sl)]
        return out

    k = corr1d(n, phi, axis=0)
    k = corr1d(k, phi, axis=1)
    return k.astype(np.float32)


def _reflect_index(m, n):
    """PyTorch ReflectionPad index map (no edge repeat); valid because pad <= n-1."""
    if m < 0:
        return -m
    if m >= n:
        return 2 * (n - 1) - m
    return m


def _reflect_band_matrix(taps, n):
    """(n, n) matrix A with (A @ x)[i] = sum_t taps[t] * x[reflect(i + t - pad)],
    i.e. 1-D cross-correlation with reflection padding folded into the rows."""
    ks = len(taps)
    pad = ks // 2
    a = np.zeros((n, n), np.float64)
    for i in range(n):
        for t in range(ks):
            a[i, _reflect_index(i + t - pad, n)] += taps[t]
    return a


def _decompose_kernel(k2d, H, W, rel_tol=1e-7):
    """SVD-split the 2-D kernel into separable rank components and fold reflection
    padding into per-component band matrices.

    Returns Av (R, H, H) and Ah (R, W, W) in f32 such that, for every channel plane x,
        sum_r Av[r] @ x @ Ah[r]  ==  ReflectionPad2d(pad) + cross-correlation(k2d).
    """
    k = np.asarray(k2d, np.float64)
    u, s, vt = np.linalg.svd(k)
    if s[0] <= 0.0:  # degenerate all-zero kernel
        return np.zeros((1, H, H), np.float32), np.zeros((1, W, W), np.float32)
    keep = np.nonzero(s > s[0] * rel_tol)[0]
    av, ah = [], []
    for r in keep:
        wv = u[:, r] * np.sqrt(s[r])   # vertical taps of component r
        wh = vt[r] * np.sqrt(s[r])     # horizontal taps of component r
        av.append(_reflect_band_matrix(wv, H))
        ah.append(_reflect_band_matrix(wh, W).T)
    return np.stack(av).astype(np.float32), np.stack(ah).astype(np.float32)


def _make_blur_kernel(C, R, TH, H, W):
    def kernel(av_ref, ah_ref, x_ref, o_ref):
        # av_ref: (R, TH, H)  rows of the vertical band matrices for this output strip
        # ah_ref: (R, W, W)   horizontal band matrices (reflection folded in)
        # x_ref:  (1, C, H, W) input block ; o_ref: (1, C, TH, W) output strip
        for c in range(C):
            xc = x_ref[0, c, :, :].astype(jnp.float32)            # (H, W)
            acc = jnp.zeros((TH, W), jnp.float32)
            for r in range(R):
                t = jnp.dot(av_ref[r, :, :], xc,
                            preferred_element_type=jnp.float32)   # (TH, W)  MXU
                acc = acc + jnp.dot(t, ah_ref[r, :, :],
                                    preferred_element_type=jnp.float32)  # MXU
            o_ref[0, c, :, :] = acc.astype(o_ref.dtype)
    return kernel


def _pick_strip(H):
    """Largest multiple-of-8 divisor of H that is <= 256 (full plane for small H or
    when no such divisor exists) -> bounds per-step VMEM and adds a parallel axis."""
    if H <= 256:
        return H
    for th in range(256, 7, -8):
        if H % th == 0:
            return th
    return H


def blur_forward(x, k2d):
    """x: (N, 3, H, W); k2d: concrete (KS, KS) kernel (the module's self.k, copied into
    every grouped channel filter).  Returns ReflectionPad2d(KS//2) + depthwise
    cross-correlation, matching the PyTorch module's forward().

    Note: band matrices are built host-side, so k2d must be concrete (update_weights
    under jit / with traced weights is not supported — same restriction as before)."""
    x = jnp.asarray(x)
    N, C, H, W = x.shape
    assert C == CHANNELS, "module hard-codes Conv2d(3, 3, ...)"
    k = np.asarray(jax.device_get(k2d), dtype=np.float64)
    KS = int(k.shape[-1])
    assert k.shape == (KS, KS)
    assert KS % 2 == 1, "kernel_size must be odd (the module asserts this too)"
    pad = KS // 2
    assert pad <= H - 1 and pad <= W - 1, "ReflectionPad2d requires pad < H and pad < W"

    av, ah = _decompose_kernel(k, H, W)       # (R, H, H), (R, W, W) f32
    R = int(av.shape[0])
    TH = _pick_strip(H)
    n_strips = H // TH

    itemsize = x.dtype.itemsize
    cost = pl.CostEstimate(
        flops=int(2 * N * C * R * (H * H * W + H * W * W)),
        transcendentals=0,
        bytes_accessed=int(2 * N * C * H * W * itemsize + av.nbytes + ah.nbytes))

    # Per-step VMEM working set: double-buffered blocks + in-kernel f32 temporaries.
    step_bytes = (2 * (R * TH * H * 4 + R * W * W * 4
                       + C * H * W * itemsize + C * TH * W * itemsize)
                  + 4 * (H * W + 2 * TH * W))
    vmem_limit = None
    if step_bytes > 24 * 1024 * 1024:
        # TODO(synk): v7x has only 64 MiB physical VMEM; for very large planes the input
        # should also be strip-tiled with a 2*pad halo instead of kept fully resident.
        vmem_limit = int(min(max(2 * step_bytes, 32 * 1024 * 1024), 96 * 1024 * 1024))

    return pl.pallas_call(
        _make_blur_kernel(C, R, TH, H, W),
        out_shape=jax.ShapeDtypeStruct((N, C, H, W), x.dtype),
        grid_spec=pltpu.PrefetchScalarGridSpec(
            num_scalar_prefetch=0,
            grid=(N, n_strips),
            in_specs=[
                pl.BlockSpec((R, TH, H), lambda n, s: (0, s, 0)),   # vertical bands
                pl.BlockSpec((R, W, W), lambda n, s: (0, 0, 0)),    # horizontal bands
                pl.BlockSpec((1, C, H, W), lambda n, s: (n, 0, 0, 0)),
            ],
            out_specs=pl.BlockSpec((1, C, TH, W), lambda n, s: (n, 0, s, 0)),
        ),
        compiler_params=pltpu.CompilerParams(
            dimension_semantics=("parallel", "parallel"),
            vmem_limit_bytes=vmem_limit),
        cost_estimate=cost,
    )(jnp.asarray(av), jnp.asarray(ah), x)


if __name__ == "__main__":
    N, C = 2, CHANNELS
    H = W = 64                      # module default img_size
    KERNEL_SIZE, STD = 31, 3.0      # module defaults

    # weights_init(): the same 2-D gaussian kernel is copied into every grouped filter
    k2d = _gaussian_kernel_2d(KERNEL_SIZE, STD)        # == the module's self.k

    key = jax.random.PRNGKey(0)
    x = jax.random.normal(key, (N, C, H, W), dtype=jnp.float32)

    def ref_conv(x, k):
        ks = k.shape[-1]
        p = ks // 2
        w = jnp.broadcast_to(jnp.asarray(k, jnp.float32), (C, ks, ks))[:, None]
        xp = jnp.pad(x, ((0, 0), (0, 0), (p, p), (p, p)), mode="reflect")
        return lax.conv_general_dilated(
            xp, w, window_strides=(1, 1), padding="VALID",
            dimension_numbers=("NCHW", "OIHW", "NCHW"), feature_group_count=C,
            precision=lax.Precision.HIGHEST)

    # 1) module weights (gaussian -> rank-1): two MXU matmuls per channel plane
    out = jax.block_until_ready(blur_forward(x, k2d))
    ref = np.asarray(ref_conv(x, k2d))
    assert out.shape == (N, C, H, W) and out.dtype == x.dtype
    err = float(np.max(np.abs(np.asarray(out) - ref)))
    tol = 1e-3 * max(1.0, float(np.max(np.abs(ref))))
    assert err < tol, (err, tol)

    # 2) arbitrary (non-separable) kernel, as update_weights() allows: full-rank path
    k_rand = np.asarray(jax.random.normal(jax.random.PRNGKey(1), (5, 5)), np.float32)
    out2 = jax.block_until_ready(blur_forward(x, k_rand))
    ref2 = np.asarray(ref_conv(x, k_rand))
    err2 = float(np.max(np.abs(np.asarray(out2) - ref2)))
    tol2 = 1e-3 * max(1.0, float(np.max(np.abs(ref2))))
    assert err2 < tol2, (err2, tol2)

    # TODO(synk): the SVD helper methods (construct_1d_convolution_matrix_from_2d_kernel,
    # V/Vt/U/Ut, singulars, add_zeros, compute_ybar) are not part of forward() and are
    # not implemented here.
    print("KERNEL_OK")
</pallas_src>

<mosaic_0001>
module attributes {stable_mosaic.version = 11 : i64} {
  func.func @kernel(%arg0: i32, %arg1: i32, %arg2: memref<1x64x64xf32, #tpu.memory_space<vmem>>, %arg3: memref<1x64x64xf32, #tpu.memory_space<vmem>>, %arg4: memref<1x3x64x64xf32, #tpu.memory_space<vmem>>, %arg5: memref<1x3x64x64xf32, #tpu.memory_space<vmem>>) attributes {dimension_semantics = [#tpu.dimension_semantics<parallel>, #tpu.dimension_semantics<parallel>], iteration_bounds = array<i64: 2, 1>, scalar_prefetch = 0 : i64, scratch_operands = 0 : i64, tpu.core_type = #tpu.core_type<tc>, window_params = [{transform_indices = @transform_0, window_bounds = array<i64: 1, 64, 64>}, {pipeline_mode = #tpu.pipeline_mode<synchronous>, transform_indices = @transform_1, window_bounds = array<i64: 1, 64, 64>}, {transform_indices = @transform_2, window_bounds = array<i64: 1, 3, 64, 64>}, {transform_indices = @transform_3, window_bounds = array<i64: 1, 3, 64, 64>}]} {
    %c0 = arith.constant 0 : index
    %c0_0 = arith.constant 0 : index
    %c0_1 = arith.constant 0 : index
    %c0_2 = arith.constant 0 : index
    %0 = vector.load %arg4[%c0, %c0_0, %c0_1, %c0_2] : memref<1x3x64x64xf32, #tpu.memory_space<vmem>>, vector<1x1x64x64xf32>
    %1 = vector.shape_cast %0 : vector<1x1x64x64xf32> to vector<64x64xf32>
    %cst = arith.constant 0.000000e+00 : f32
    %2 = vector.broadcast %cst : f32 to vector<64x64xf32>
    %c0_3 = arith.constant 0 : index
    %c0_4 = arith.constant 0 : index
    %c0_5 = arith.constant 0 : index
    %3 = vector.load %arg2[%c0_3, %c0_4, %c0_5] : memref<1x64x64xf32, #tpu.memory_space<vmem>>, vector<1x64x64xf32>
    %4 = vector.shape_cast %3 : vector<1x64x64xf32> to vector<64x64xf32>
    %cst_6 = arith.constant dense<0.000000e+00> : vector<64x64xf32>
    %5 = tpu.matmul %4, %1, %cst_6 {dimension_numbers = #tpu.dot_dimension_numbers<[1], [0], [0], [1], [0, 0, 1, 1], [], []>} : vector<64x64xf32>, vector<64x64xf32>, vector<64x64xf32> -> vector<64x64xf32>
    %c0_7 = arith.constant 0 : index
    %c0_8 = arith.constant 0 : index
    %c0_9 = arith.constant 0 : index
    %6 = vector.load %arg3[%c0_7, %c0_8, %c0_9] : memref<1x64x64xf32, #tpu.memory_space<vmem>>, vector<1x64x64xf32>
    %7 = vector.shape_cast %6 : vector<1x64x64xf32> to vector<64x64xf32>
    %cst_10 = arith.constant dense<0.000000e+00> : vector<64x64xf32>
    %8 = tpu.matmul %5, %7, %cst_10 {dimension_numbers = #tpu.dot_dimension_numbers<[1], [0], [0], [1], [0, 0, 1, 1], [], []>} : vector<64x64xf32>, vector<64x64xf32>, vector<64x64xf32> -> vector<64x64xf32>
    %9 = arith.addf %2, %8 : vector<64x64xf32>
    %c0_11 = arith.constant 0 : index
    %c0_12 = arith.constant 0 : index
    %c0_13 = arith.constant 0 : index
    %c0_14 = arith.constant 0 : index
    %10 = vector.load %arg5[%c0_11, %c0_12, %c0_13, %c0_14] : memref<1x3x64x64xf32, #tpu.memory_space<vmem>>, vector<1x1x64x64xf32>
    %11 = vector.shape_cast %10 : vector<1x1x64x64xf32> to vector<64x64xf32>
    %12 = vector.shape_cast %9 : vector<64x64xf32> to vector<1x1x64x64xf32>
    tpu.vector_store %arg5[%c0_11, %c0_12, %c0_13, %c0_14], %12 {strides = array<i32>} : memref<1x3x64x64xf32, #tpu.memory_space<vmem>>, vector<1x1x64x64xf32>,
    %c0_15 = arith.constant 0 : index
    %c1 = arith.constant 1 : index
    %c0_16 = arith.constant 0 : index
    %c0_17 = arith.constant 0 : index
    %13 = vector.load %arg4[%c0_15, %c1, %c0_16, %c0_17] : memref<1x3x64x64xf32, #tpu.memory_space<vmem>>, vector<1x1x64x64xf32>
    %14 = vector.shape_cast %13 : vector<1x1x64x64xf32> to vector<64x64xf32>
    %cst_18 = arith.constant 0.000000e+00 : f32
    %15 = vector.broadcast %cst_18 : f32 to vector<64x64xf32>
    %c0_19 = arith.constant 0 : index
    %c0_20 = arith.constant 0 : index
    %c0_21 = arith.constant 0 : index
    %16 = vector.load %arg2[%c0_19, %c0_20, %c0_21] : memref<1x64x64xf32, #tpu.memory_space<vmem>>, vector<1x64x64xf32>
    %17 = vector.shape_cast %16 : vector<1x64x64xf32> to vector<64x64xf32>
    %cst_22 = arith.constant dense<0.000000e+00> : vector<64x64xf32>
    %18 = tpu.matmul %17, %14, %cst_22 {dimension_numbers = #tpu.dot_dimension_numbers<[1], [0], [0], [1], [0, 0, 1, 1], [], []>} : vector<64x64xf32>, vector<64x64xf32>, vector<64x64xf32> -> vector<64x64xf32>
    %c0_23 = arith.constant 0 : index
    %c0_24 = arith.constant 0 : index
    %c0_25 = arith.constant 0 : index
    %19 = vector.load %arg3[%c0_23, %c0_24, %c0_25] : memref<1x64x64xf32, #tpu.memory_space<vmem>>, vector<1x64x64xf32>
    %20 = vector.shape_cast %19 : vector<1x64x64xf32> to vector<64x64xf32>
    %cst_26 = arith.constant dense<0.000000e+00> : vector<64x64xf32>
    %21 = tpu.matmul %18, %20, %cst_26 {dimension_numbers = #tpu.dot_dimension_numbers<[1], [0], [0], [1], [0, 0, 1, 1], [], []>} : vector<64x64xf32>, vector<64x64xf32>, vector<64x64xf32> -> vector<64x64xf32>
    %22 = arith.addf %15, %21 : vector<64x64xf32>
    %c0_27 = arith.constant 0 : index
    %c1_28 = arith.constant 1 : index
    %c0_29 = arith.constant 0 : index
    %c0_30 = arith.constant 0 : index
    %23 = vector.load %arg5[%c0_27, %c1_28, %c0_29, %c0_30] : memref<1x3x64x64xf32, #tpu.memory_space<vmem>>, vector<1x1x64x64xf32>
    %24 = vector.shape_cast %23 : vector<1x1x64x64xf32> to vector<64x64xf32>
    %25 = vector.shape_cast %22 : vector<64x64xf32> to vector<1x1x64x64xf32>
    tpu.vector_store %arg5[%c0_27, %c1_28, %c0_29, %c0_30], %25 {strides = array<i32>} : memref<1x3x64x64xf32, #tpu.memory_space<vmem>>, vector<1x1x64x64xf32>,
    %c0_31 = arith.constant 0 : index
    %c2 = arith.constant 2 : index
    %c0_32 = arith.constant 0 : index
    %c0_33 = arith.constant 0 : index
    %26 = vector.load %arg4[%c0_31, %c2, %c0_32, %c0_33] : memref<1x3x64x64xf32, #tpu.memory_space<vmem>>, vector<1x1x64x64xf32>
    %27 = vector.shape_cast %26 : vector<1x1x64x64xf32> to vector<64x64xf32>
    %cst_34 = arith.constant 0.000000e+00 : f32
    %28 = vector.broadcast %cst_34 : f32 to vector<64x64xf32>
    %c0_35 = arith.constant 0 : index
    %c0_36 = arith.constant 0 : index
    %c0_37 = arith.constant 0 : index
    %29 = vector.load %arg2[%c0_35, %c0_36, %c0_37] : memref<1x64x64xf32, #tpu.memory_space<vmem>>, vector<1x64x64xf32>
    %30 = vector.shape_cast %29 : vector<1x64x64xf32> to vector<64x64xf32>
    %cst_38 = arith.constant dense<0.000000e+00> : vector<64x64xf32>
    %31 = tpu.matmul %30, %27, %cst_38 {dimension_numbers = #tpu.dot_dimension_numbers<[1], [0], [0], [1], [0, 0, 1, 1], [], []>} : vector<64x64xf32>, vector<64x64xf32>, vector<64x64xf32> -> vector<64x64xf32>
    %c0_39 = arith.constant 0 : index
    %c0_40 = arith.constant 0 : index
    %c0_41 = arith.constant 0 : index
    %32 = vector.load %arg3[%c0_39, %c0_40, %c0_41] : memref<1x64x64xf32, #tpu.memory_space<vmem>>, vector<1x64x64xf32>
    %33 = vector.shape_cast %32 : vector<1x64x64xf32> to vector<64x64xf32>
    %cst_42 = arith.constant dense<0.000000e+00> : vector<64x64xf32>
    %34 = tpu.matmul %31, %33, %cst_42 {dimension_numbers = #tpu.dot_dimension_numbers<[1], [0], [0], [1], [0, 0, 1, 1], [], []>} : vector<64x64xf32>, vector<64x64xf32>, vector<64x64xf32> -> vector<64x64xf32>
    %35 = arith.addf %28, %34 : vector<64x64xf32>
    %c0_43 = arith.constant 0 : index
    %c2_44 = arith.constant 2 : index
    %c0_45 = arith.constant 0 : index
    %c0_46 = arith.constant 0 : index
    %36 = vector.load %arg5[%c0_43, %c2_44, %c0_45, %c0_46] : memref<1x3x64x64xf32, #tpu.memory_space<vmem>>, vector<1x1x64x64xf32>
    %37 = vector.shape_cast %36 : vector<1x1x64x64xf32> to vector<64x64xf32>
    %38 = vector.shape_cast %35 : vector<64x64xf32> to vector<1x1x64x64xf32>
    tpu.vector_store %arg5[%c0_43, %c2_44, %c0_45, %c0_46], %38 {strides = array<i32>} : memref<1x3x64x64xf32, #tpu.memory_space<vmem>>, vector<1x1x64x64xf32>,
    return
  }
  func.func @transform_0(%arg0: i32, %arg1: i32) -> (i32, i32, i32) {
    %c0_i32 = arith.constant 0 : i32
    %c0_i32_0 = arith.constant 0 : i32
    %c0_i32_1 = arith.constant 0 : i32
    return %c0_i32, %arg1, %c0_i32_0 : i32, i32, i32
  }
  func.func @transform_1(%arg0: i32, %arg1: i32) -> (i32, i32, i32) {
    %c0_i32 = arith.constant 0 : i32
    %c0_i32_0 = arith.constant 0 : i32
    %c0_i32_1 = arith.constant 0 : i32
    %c0_i32_2 = arith.constant 0 : i32
    return %c0_i32, %c0_i32_0, %c0_i32_1 : i32, i32, i32
  }
  func.func @transform_2(%arg0: i32, %arg1: i32) -> (i32, i32, i32, i32) {
    %c0_i32 = arith.constant 0 : i32
    %c0_i32_0 = arith.constant 0 : i32
    %c0_i32_1 = arith.constant 0 : i32
    %c0_i32_2 = arith.constant 0 : i32
    return %arg0, %c0_i32, %c0_i32_0, %c0_i32_1 : i32, i32, i32, i32
  }
  func.func @transform_3(%arg0: i32, %arg1: i32) -> (i32, i32, i32, i32) {
    %c0_i32 = arith.constant 0 : i32
    %c0_i32_0 = arith.constant 0 : i32
    %c0_i32_1 = arith.constant 0 : i32
    return %arg0, %c0_i32, %arg1, %c0_i32_0 : i32, i32, i32, i32
  }
}

</mosaic_0001>

<llo_original>
// kernel: tpu_custom_call.1
$region0: #{tpu_custom_call.1}
  #allocation0 [shape = 'u32[]', space=smem, size = 0x4, offset = 0x4, fixed_abs, tag = 'smem constant byte address 0x4 - core index']
  #allocation1 [shape = 'u32[144,128]{1,0:T(1,128)}', space=vmem, size = 0x12000, scoped, tag = 'internal scratch']
  %s0 = inlined_call_operand.hbm [shape: f32[1,64,64], index: 0, kind: input, shape index: {}]
  %s1 = inlined_call_operand.hbm [shape: f32[1,64,64], index: 1, kind: input, shape index: {}]
  %s2 = inlined_call_operand.hbm [shape: f32[2,3,64,64], index: 2, kind: input, shape index: {}]
  %s3 = inlined_call_operand.hbm [shape: f32[2,3,64,64], index: 3, kind: output, shape index: {}]
  %s4 = sld [smem:[#allocation0]]
  $region57: #{tpu_custom_call.1} parent=0
    _
  %s6 = ssub.s32 1, %s4
  %s7 = scalar_select 0, %s6, %s4
  $region1: #{tpu_custom_call.1} parent=0
    #allocation2 [shape = 'u8[32768]{0}', space=vmem, size = 0x8000, scoped, tag = 'input window, operand 0, single buffered']
    #allocation3 [shape = 's32[2]{0}', space=sflag, size = 0x8, scoped, tag = 'scoped memory for tpu_custom_call.1']
    #allocation4 [shape = 's32[2]{0}', space=sflag, size = 0x8, scoped, tag = 'scoped memory for tpu_custom_call.1']
    #allocation5 [shape = 'u8[32768]{0}', space=vmem, size = 0x8000, scoped, tag = 'input window, operand 1, single buffered']
    #allocation6 [shape = 's32[1]{0}', space=sflag, size = 0x4, scoped, tag = 'scoped memory for tpu_custom_call.1']
    #allocation7 [shape = 'u8[196608]{0}', space=vmem, size = 0x30000, scoped, tag = 'input window, operand 2']
    #allocation8 [shape = 'u8[196608]{0}', space=vmem, size = 0x30000, scoped, tag = 'output window, operand 0']
    %8 = vsyncpa [#allocation3], 0
    %9 = vsyncpa [#allocation6], 0
    %10 = vsyncpa [#allocation4], 0
    %s11 = scalar_lea.sflag [#allocation4], 1
    %12 = vsyncpa %s11, 0
    loop: start=0, step=1, limit=4
    $region2: #{tpu_custom_call.1} parent=1 // loop_pre_header
      _
    $region3: #{tpu_custom_call.1} parent=1 // loop_header
      %s14 = sphi 0, %s18
      %p15 = scmp.ge.s32.totalorder %s14, 4
      %s21 = sphi 0, %s33
      %s22 = sphi 0, %s29
      %s23 = sphi 0, %s21
      %s24 = sphi 0, %s22
      %s25 = sphi 0, %s23
      %s26 = sphi 0, %s24
      %s36 = sphi 0, %s38
      %s39 = sphi 0, %s36
      %s40 = sphi 0, %s39
      %s56 = sphi 0, %s40
      %s60 = sphi 0, %s60
      %s62 = sphi 0, %s60
      %s63 = sphi 0, %s62
      %s77 = sphi 0, %s63
      %s83 = sphi 0, %s85
      %s86 = sphi 0, %s83
      %s87 = sphi 0, %s86
      %s103 = sphi 0, %s87
      %s111 = sphi 0, %s113
      %s114 = sphi 0, %s111
      %s115 = sphi 0, %s114
      %s131 = sphi 0, %s115
    $region4: #{tpu_custom_call.1} parent=1 // loop_header_branch
      %17 = sbr.rel (%p15) target = $region8
    $region5: #{tpu_custom_call.1} parent=1 // loop_body
      %s19 = ssub.s32 %s14, 1
      %s20 = ssub.s32 %s14, 2
      %s27 = sadd.s32 1, %s22
      %p28 = scmp.ge.s32.totalorder %s27, 1
      %s29 = scalar_select %p28, 0, %s27
      %s30 = sadd.s32 1, %s21
      %s31 = scalar_select %p28, %s30, %s21
      %p32 = scmp.ge.s32.totalorder %s31, 2
      %s33 = scalar_select %p32, 0, %s31
      %s34 = ssub.s32 %s22, %s29
      %p35 = scmp.eq.s32.totalorder %s34, 0
      %s37 = sadd.s32 %s36, 1
      %s38 = scalar_select %p35, %s36, %s37
      %p41 = pneg %p35
      %p42 = scmp.eq.s32.totalorder %s14, 1
      %p43 = por %p41, %p42
      %p44 = scmp.ne.s32.totalorder %s36, %s39
      %p45 = scmp.eq.s32.totalorder %s14, 0
      %p46 = por %p44, %p45
      %p47 = scmp.ne.s32.totalorder %s36, %s39
      %p48 = scmp.eq.s32.totalorder %s19, 1
      %p49 = por %p47, %p48
      %p50 = scmp.ne.s32.totalorder %s39, %s40
      %p51 = scmp.eq.s32.totalorder %s19, 0
      %p52 = por %p50, %p51
      %p53 = scmp.ne.s32.totalorder %s39, %s40
      %p54 = scmp.eq.s32.totalorder %s20, 1
      %p55 = por %p53, %p54
      %p57 = scmp.ne.s32.totalorder %s40, %s56
      %p58 = scmp.eq.s32.totalorder %s20, 0
      %p59 = por %p57, %p58
      %s61 = sadd.s32 %s60, 1
      %p64 = scmp.eq.s32.totalorder %s14, 1
      %p65 = scmp.ne.s32.totalorder %s60, %s62
      %p66 = scmp.eq.s32.totalorder %s14, 0
      %p67 = por %p65, %p66
      %p68 = scmp.ne.s32.totalorder %s60, %s62
      %p69 = scmp.eq.s32.totalorder %s19, 1
      %p70 = por %p68, %p69
      %p71 = scmp.ne.s32.totalorder %s62, %s63
      %p72 = scmp.eq.s32.totalorder %s19, 0
      %p73 = por %p71, %p72
      %p74 = scmp.ne.s32.totalorder %s62, %s63
      %p75 = scmp.eq.s32.totalorder %s20, 1
      %p76 = por %p74, %p75
      %p78 = scmp.ne.s32.totalorder %s63, %s77
      %p79 = scmp.eq.s32.totalorder %s20, 0
      %p80 = por %p78, %p79
      %s81 = ssub.s32 %s21, %s33
      %p82 = scmp.eq.s32.totalorder %s81, 0
      %s84 = sadd.s32 %s83, 1
      %s85 = scalar_select %p82, %s83, %s84
      %p88 = pneg %p82
      %p89 = scmp.eq.s32.totalorder %s14, 1
      %p90 = por %p88, %p89
      %p91 = scmp.ne.s32.totalorder %s83, %s86
      %p92 = scmp.eq.s32.totalorder %s14, 0
      %p93 = por %p91, %p92
      %p94 = scmp.ne.s32.totalorder %s83, %s86
      %p95 = scmp.eq.s32.totalorder %s19, 1
      %p96 = por %p94, %p95
      %p97 = scmp.ne.s32.totalorder %s86, %s87
      %p98 = scmp.eq.s32.totalorder %s19, 0
      %p99 = por %p97, %p98
      %p100 = scmp.ne.s32.totalorder %s86, %s87
      %p101 = scmp.eq.s32.totalorder %s20, 1
      %p102 = por %p100, %p101
      %p104 = scmp.ne.s32.totalorder %s87, %s103
      %p105 = scmp.eq.s32.totalorder %s20, 0
      %p106 = por %p104, %p105
      %s107 = ssub.s32 %s21, %s33
      %s108 = ssub.s32 %s22, %s29
      %s109 = sor.u32 %s107, %s108
      %p110 = scmp.eq.s32.totalorder %s109, 0
      %s112 = sadd.s32 %s111, 1
      %s113 = scalar_select %p110, %s111, %s112
      %p116 = pneg %p110
      %p117 = scmp.eq.s32.totalorder %s14, 1
      %p118 = por %p116, %p117
      %p119 = scmp.ne.s32.totalorder %s111, %s114
      %p120 = scmp.eq.s32.totalorder %s14, 0
      %p121 = por %p119, %p120
      %p122 = scmp.ne.s32.totalorder %s111, %s114
      %p123 = scmp.eq.s32.totalorder %s19, 1
      %p124 = por %p122, %p123
      %p125 = scmp.ne.s32.totalorder %s114, %s115
      %p126 = scmp.eq.s32.totalorder %s19, 0
      %p127 = por %p125, %p126
      %p128 = scmp.ne.s32.totalorder %s114, %s115
      %p129 = scmp.eq.s32.totalorder %s20, 1
      %p130 = por %p128, %p129
      %p132 = scmp.ne.s32.totalorder %s115, %s131
      %p133 = scmp.eq.s32.totalorder %s20, 0
      %p134 = por %p132, %p133
      %p135 = scmp.le.s32.totalorder 1, %s14
      %p136 = scmp.lt.s32.totalorder %s14, 3
      %p137 = pnand %p135, %p136
      %p138 = pneg %p137
      // Predicated region
      $region9: #{tpu_custom_call.1} parent=5 // pred_check
        _
      $region10: #{tpu_custom_call.1} parent=5 // pred_check_branch
        %140 = sbr.rel (%p137) target = $region12
      $region11: #{tpu_custom_call.1} parent=5 // pred_region
        %s141 = ssub.s32 %s14, 1
        // Predicated region
        $region13: #{tpu_custom_call.1} parent=11 // pred_check
          %p142 = pneg %p52
        $region14: #{tpu_custom_call.1} parent=11 // pred_check_branch
          %144 = sbr.rel (%p142) target = $region16
        $region15: #{tpu_custom_call.1} parent=11 // pred_region
          %s145 = smul.u32 8, %s24
          %s147 = ssub.s32 1024, 1024
          %148 = vsyncadd [#allocation3], %s147
          %s149 = smul.addr %s145, 128
          %s150 = scalar_lea.hbm %s0, %s149
          %s151 = sshll.u32 [#allocation2], 4
          %s152 = int_to_ptr.vmem [resolvable:$true] %s151
          %157 = dma.hbm_to_vmem [thread:$0]  %s150, 1024, %s152, [#allocation3], 128, 128, 8
        $region16: #{tpu_custom_call.1} parent=11 // pred_fallthru
          _
        // Predicated region
        $region17: #{tpu_custom_call.1} parent=11 // pred_check
          %p158 = pneg %p73
        $region18: #{tpu_custom_call.1} parent=11 // pred_check_branch
          %160 = sbr.rel (%p158) target = $region20
        $region19: #{tpu_custom_call.1} parent=11 // pred_region
          %s162 = ssub.s32 1024, 1024
          %163 = vsyncadd [#allocation6], %s162
          %s164 = sshll.u32 [#allocation5], 4
          %s165 = int_to_ptr.vmem [resolvable:$true] %s164
          %170 = dma.hbm_to_vmem [thread:$0]  %s1, 1024, %s165, [#allocation6], 128, 128, 8
        $region20: #{tpu_custom_call.1} parent=11 // pred_fallthru
          _
      $region12: #{tpu_custom_call.1} parent=5 // pred_fallthru
        _
      %p171 = scmp.lt.s32.totalorder %s14, 2
      // Predicated region
      $region21: #{tpu_custom_call.1} parent=5 // pred_check
        %p172 = pneg %p171
      $region22: #{tpu_custom_call.1} parent=5 // pred_check_branch
        %174 = sbr.rel (%p172) target = $region24
      $region23: #{tpu_custom_call.1} parent=5 // pred_region
        // Predicated region
        $region25: #{tpu_custom_call.1} parent=23 // pred_check
          %p175 = pneg %p93
        $region26: #{tpu_custom_call.1} parent=23 // pred_check_branch
          %177 = sbr.rel (%p175) target = $region28
        $region27: #{tpu_custom_call.1} parent=23 // pred_region
          %s178 = sand.u32 %s14, 1
          %s179 = scalar_lea.sflag [#allocation3], %s178
          %s180 = sand.u32 %s83, 1
          %s181 = smul.addr %s180, 192
          %s182 = scalar_lea.vmem [#allocation7], %s181
          %s184 = ssub.s32 3072, 3072
          %185 = vsyncadd %s179, %s184
          %s186 = smul.addr %s21, 24
          %s187 = smul.addr %s186, 128
          %s188 = scalar_lea.hbm %s2, %s187
          %s189 = sshll.u32 %s182, 4
          %s190 = int_to_ptr.vmem [resolvable:$true] %s189
          %195 = dma.hbm_to_vmem [thread:$0]  %s188, 3072, %s190, %s179, 128, 128, 8
        $region28: #{tpu_custom_call.1} parent=23 // pred_fallthru
          _
      $region24: #{tpu_custom_call.1} parent=5 // pred_fallthru
        _
      %p196 = scmp.le.s32.totalorder 1, %s14
      %p197 = scmp.lt.s32.totalorder %s14, 3
      %p198 = pnand %p196, %p197
      %p199 = pneg %p198
      // Predicated region
      $region29: #{tpu_custom_call.1} parent=5 // pred_check
        _
      $region30: #{tpu_custom_call.1} parent=5 // pred_check_branch
        %201 = sbr.rel (%p198) target = $region32
      $region31: #{tpu_custom_call.1} parent=5 // pred_region
        %s202 = ssub.s32 %s14, 1
        // Predicated region
        $region33: #{tpu_custom_call.1} parent=31 // pred_check
          %p203 = pneg %p52
        $region34: #{tpu_custom_call.1} parent=31 // pred_check_branch
          %205 = sbr.rel (%p203) target = $region36
        $region35: #{tpu_custom_call.1} parent=31 // pred_region
          %206 = dma.done [#allocation3], 1024
        $region36: #{tpu_custom_call.1} parent=31 // pred_fallthru
          _
        // Predicated region
        $region37: #{tpu_custom_call.1} parent=31 // pred_check
          %p207 = pneg %p73
        $region38: #{tpu_custom_call.1} parent=31 // pred_check_branch
          %209 = sbr.rel (%p207) target = $region40
        $region39: #{tpu_custom_call.1} parent=31 // pred_region
          %210 = dma.done [#allocation6], 1024
        $region40: #{tpu_custom_call.1} parent=31 // pred_fallthru
          _
        %s211 = sand.u32 %s19, 1
        %s212 = scalar_lea.sflag [#allocation3], %s211
        %s213 = sand.u32 %s86, 1
        %s214 = smul.addr %s213, 192
        %s215 = scalar_lea.vmem [#allocation7], %s214
        // Predicated region
        $region41: #{tpu_custom_call.1} parent=31 // pred_check
          %p216 = pneg %p99
        $region42: #{tpu_custom_call.1} parent=31 // pred_check_branch
          %218 = sbr.rel (%p216) target = $region44
        $region43: #{tpu_custom_call.1} parent=31 // pred_region
          %219 = dma.done %s212, 3072
        $region44: #{tpu_custom_call.1} parent=31 // pred_fallthru
          _
        %p220 = pneg %p52
        %p221 = pneg %p49
        %p222 = pneg %p73
        %p223 = pneg %p70
        %s224 = sand.u32 %s19, 1
        %s225 = scalar_lea.sflag [#allocation3], %s224
        %s226 = sand.u32 %s86, 1
        %s227 = smul.addr %s226, 192
        %s228 = scalar_lea.vmem [#allocation7], %s227
        %p229 = pneg %p99
        %p230 = pneg %p96
        %p231 = pneg %p127
        %p232 = pneg %p124
        %s233 = sand.u32 %s114, 1
        %s234 = scalar_lea.sflag [#allocation4], %s233
        %s235 = sand.u32 %s114, 1
        %s236 = smul.addr %s235, 192
        %s237 = scalar_lea.vmem [#allocation8], %s236
        %s238 = smul.u32 8, %s24
        %s239 = smul.u32 8, %s24
        %v240 = vld [vmem:[%s215] sm:$0xff]
        %v241 = vld [vmem:[%s215 + $0x8] sm:$0xff]
        %v242 = vld [vmem:[%s215 + $0x10] sm:$0xff]
        %v243 = vld [vmem:[%s215 + $0x18] sm:$0xff]
        %v244 = vld [vmem:[%s215 + $0x20] sm:$0xff]
        %v245 = vld [vmem:[%s215 + $0x28] sm:$0xff]
        %v246 = vld [vmem:[%s215 + $0x30] sm:$0xff]
        %v247 = vld [vmem:[%s215 + $0x38] sm:$0xff]
        %v248 = vld [vmem:[#allocation2] sm:$0xff]
        %v249 = vld [vmem:[#allocation2 + $0x8] sm:$0xff]
        %v250 = vld [vmem:[#allocation2 + $0x10] sm:$0xff]
        %v251 = vld [vmem:[#allocation2 + $0x18] sm:$0xff]
        %v252 = vld [vmem:[#allocation2 + $0x20] sm:$0xff]
        %v253 = vld [vmem:[#allocation2 + $0x28] sm:$0xff]
        %v254 = vld [vmem:[#allocation2 + $0x30] sm:$0xff]
        %v255 = vld [vmem:[#allocation2 + $0x38] sm:$0xff]
        %vm256 = vcmask 523264
        %v258 = vsel %vm256, %v248, 0
        %v261 = vsel %vm256, %v249, 0
        %v264 = vsel %vm256, %v250, 0
        %v267 = vsel %vm256, %v251, 0
        %v270 = vsel %vm256, %v252, 0
        %v273 = vsel %vm256, %v253, 0
        %v276 = vsel %vm256, %v254, 0
        %v279 = vsel %vm256, %v255, 0
        %281 = vmatprep.subr.mxu0 0.0
        %282 = vmatpush1.msra.mxu0 0.0
        %283 = vmatprep.subr.mxu0 0.0
        %284 = vmatpush1.msra.mxu0 0.0
        %285 = vmatprep.subr.mxu0 0.0
        %286 = vmatpush1.msra.mxu0 0.0
        %287 = vmatprep.subr.mxu0 0.0
        %288 = vmatpush1.msra.mxu0 0.0
        %289 = vmatprep.subr.mxu0 0.0
        %290 = vmatpush1.msra.mxu0 0.0
        %291 = vmatprep.subr.mxu0 0.0
        %292 = vmatpush1.msra.mxu0 0.0
        %293 = vmatprep.subr.mxu0 0.0
        %294 = vmatpush1.msra.mxu0 0.0
        %295 = vmatprep.subr.mxu0 0.0
        %296 = vmatpush1.msra.mxu0 0.0
        %297 = vmatprep.subr.mxu0 0.0
        %298 = vmatpush1.msra.mxu0 %v247
        %299 = vmatprep.subr.mxu0 0.0
        %300 = vmatpush1.msra.mxu0 %v246
        %301 = vmatprep.subr.mxu0 0.0
        %302 = vmatpush1.msra.mxu0 %v245
        %303 = vmatprep.subr.mxu0 0.0
        %304 = vmatpush1.msra.mxu0 %v244
        %305 = vmatprep.subr.mxu0 0.0
        %306 = vmatpush1.msra.mxu0 %v243
        %307 = vmatprep.subr.mxu0 0.0
        %308 = vmatpush1.msra.mxu0 %v242
        %309 = vmatprep.subr.mxu0 0.0
        %310 = vmatpush1.msra.mxu0 %v241
        %311 = vmatprep.subr.mxu0 0.0
        %312 = vmatpush1.msra.mxu0 %v240
        %313 = vmatprep.subr.mxu0 0.0
        %314 = vmatpush2.msra.mxu0 0.0
        %315 = vmatprep.subr.mxu0 0.0
        %316 = vmatpush2.msra.mxu0 0.0
        %317 = vmatprep.subr.mxu0 0.0
        %318 = vmatpush2.msra.mxu0 0.0
        %319 = vmatprep.subr.mxu0 0.0
        %320 = vmatpush2.msra.mxu0 0.0
        %321 = vmatprep.subr.mxu0 0.0
        %322 = vmatpush2.msra.mxu0 0.0
        %323 = vmatprep.subr.mxu0 0.0
        %324 = vmatpush2.msra.mxu0 0.0
        %325 = vmatprep.subr.mxu0 0.0
        %326 = vmatpush2.msra.mxu0 0.0
        %327 = vmatprep.subr.mxu0 0.0
        %328 = vmatpush2.msra.mxu0 0.0
        %329 = vmatprep.subr.mxu0 0.0
        %330 = vmatpush2.msra.mxu0 0.0
        %331 = vmatprep.subr.mxu0 0.0
        %332 = vmatpush2.msra.mxu0 0.0
        %333 = vmatprep.subr.mxu0 0.0
        %334 = vmatpush2.msra.mxu0 0.0
        %335 = vmatprep.subr.mxu0 0.0
        %336 = vmatpush2.msra.mxu0 0.0
        %337 = vmatprep.subr.mxu0 0.0
        %338 = vmatpush2.msra.mxu0 0.0
        %339 = vmatprep.subr.mxu0 0.0
        %340 = vmatpush2.msra.mxu0 0.0
        %341 = vmatprep.subr.mxu0 0.0
        %342 = vmatpush2.msra.mxu0 0.0
        %343 = vmatprep.subr.mxu0 0.0
        %344 = vmatpush2.msra.mxu0 0.0
        %345 = vmatprep.mubr.f32.mxu0 0.0
        %346 = vmatmul.mubr.f32.gmra.mxu0 %v258
        %v347 = vpop.f32.mrf.mxu0
        %v348 = vadd.f32 0.0, %v347
        %v349 = vpop.f32.mrf.mxu0
        %350 = vmatprep.mubr.f32.mxu0 0.0
        %351 = vmatmul.mubr.f32.gmra.mxu0 %v261
        %v352 = vpop.f32.mrf.mxu0
        %v353 = vadd.f32 0.0, %v352
        %v354 = vpop.f32.mrf.mxu0
        %355 = vmatprep.mubr.f32.mxu0 0.0
        %356 = vmatmul.mubr.f32.gmra.mxu0 %v264
        %v357 = vpop.f32.mrf.mxu0
        %v358 = vadd.f32 0.0, %v357
        %v359 = vpop.f32.mrf.mxu0
        %360 = vmatprep.mubr.f32.mxu0 0.0
        %361 = vmatmul.mubr.f32.gmra.mxu0 %v267
        %v362 = vpop.f32.mrf.mxu0
        %v363 = vadd.f32 0.0, %v362
        %v364 = vpop.f32.mrf.mxu0
        %365 = vmatprep.mubr.f32.mxu0 0.0
        %366 = vmatmul.mubr.f32.gmra.mxu0 %v270
        %v367 = vpop.f32.mrf.mxu0
        %v368 = vadd.f32 0.0, %v367
        %v369 = vpop.f32.mrf.mxu0
        %370 = vmatprep.mubr.f32.mxu0 0.0
        %371 = vmatmul.mubr.f32.gmra.mxu0 %v273
        %v372 = vpop.f32.mrf.mxu0
        %v373 = vadd.f32 0.0, %v372
        %v374 = vpop.f32.mrf.mxu0
        %375 = vmatprep.mubr.f32.mxu0 0.0
        %376 = vmatmul.mubr.f32.gmra.mxu0 %v276
        %v377 = vpop.f32.mrf.mxu0
        %v378 = vadd.f32 0.0, %v377
        %v379 = vpop.f32.mrf.mxu0
        %380 = vmatprep.mubr.f32.mxu0 0.0
        %381 = vmatmul.mubr.f32.gmra.mxu0 %v279
        %v382 = vpop.f32.mrf.mxu0
        %v383 = vadd.f32 0.0, %v382
        %v384 = vpop.f32.mrf.mxu0
        %385 = vdwg.mxu0
        %v386 = vld [vmem:[#allocation5] sm:$0xff]
        %v387 = vld [vmem:[#allocation5 + $0x8] sm:$0xff]
        %v388 = vld [vmem:[#allocation5 + $0x10] sm:$0xff]
        %v389 = vld [vmem:[#allocation5 + $0x18] sm:$0xff]
        %v390 = vld [vmem:[#allocation5 + $0x20] sm:$0xff]
        %v391 = vld [vmem:[#allocation5 + $0x28] sm:$0xff]
        %v392 = vld [vmem:[#allocation5 + $0x30] sm:$0xff]
        %v393 = vld [vmem:[#allocation5 + $0x38] sm:$0xff]
        %v395 = vsel %vm256, %v348, 0
        %v398 = vsel %vm256, %v353, 0
        %v401 = vsel %vm256, %v358, 0
        %v404 = vsel %vm256, %v363, 0
        %v407 = vsel %vm256, %v368, 0
        %v410 = vsel %vm256, %v373, 0
        %v413 = vsel %vm256, %v378, 0
        %v416 = vsel %vm256, %v383, 0
        %418 = vmatprep.subr.mxu0 0.0
        %419 = vmatpush1.msra.mxu0 0.0
        %420 = vmatprep.subr.mxu0 0.0
        %421 = vmatpush1.msra.mxu0 0.0
        %422 = vmatprep.subr.mxu0 0.0
        %423 = vmatpush1.msra.mxu0 0.0
        %424 = vmatprep.subr.mxu0 0.0
        %425 = vmatpush1.msra.mxu0 0.0
        %426 = vmatprep.subr.mxu0 0.0
        %427 = vmatpush1.msra.mxu0 0.0
        %428 = vmatprep.subr.mxu0 0.0
        %429 = vmatpush1.msra.mxu0 0.0
        %430 = vmatprep.subr.mxu0 0.0
        %431 = vmatpush1.msra.mxu0 0.0
        %432 = vmatprep.subr.mxu0 0.0
        %433 = vmatpush1.msra.mxu0 0.0
        %434 = vmatprep.subr.mxu0 0.0
        %435 = vmatpush1.msra.mxu0 %v393
        %436 = vmatprep.subr.mxu0 0.0
        %437 = vmatpush1.msra.mxu0 %v392
        %438 = vmatprep.subr.mxu0 0.0
        %439 = vmatpush1.msra.mxu0 %v391
        %440 = vmatprep.subr.mxu0 0.0
        %441 = vmatpush1.msra.mxu0 %v390
        %442 = vmatprep.subr.mxu0 0.0
        %443 = vmatpush1.msra.mxu0 %v389
        %444 = vmatprep.subr.mxu0 0.0
        %445 = vmatpush1.msra.mxu0 %v388
        %446 = vmatprep.subr.mxu0 0.0
        %447 = vmatpush1.msra.mxu0 %v387
        %448 = vmatprep.subr.mxu0 0.0
        %449 = vmatpush1.msra.mxu0 %v386
        %450 = vmatprep.subr.mxu0 0.0
        %451 = vmatpush2.msra.mxu0 0.0
        %452 = vmatprep.subr.mxu0 0.0
        %453 = vmatpush2.msra.mxu0 0.0
        %454 = vmatprep.subr.mxu0 0.0
        %455 = vmatpush2.msra.mxu0 0.0
        %456 = vmatprep.subr.mxu0 0.0
        %457 = vmatpush2.msra.mxu0 0.0
        %458 = vmatprep.subr.mxu0 0.0
        %459 = vmatpush2.msra.mxu0 0.0
        %460 = vmatprep.subr.mxu0 0.0
        %461 = vmatpush2.msra.mxu0 0.0
        %462 = vmatprep.subr.mxu0 0.0
        %463 = vmatpush2.msra.mxu0 0.0
        %464 = vmatprep.subr.mxu0 0.0
        %465 = vmatpush2.msra.mxu0 0.0
        %466 = vmatprep.subr.mxu0 0.0
        %467 = vmatpush2.msra.mxu0 0.0
        %468 = vmatprep.subr.mxu0 0.0
        %469 = vmatpush2.msra.mxu0 0.0
        %470 = vmatprep.subr.mxu0 0.0
        %471 = vmatpush2.msra.mxu0 0.0
        %472 = vmatprep.subr.mxu0 0.0
        %473 = vmatpush2.msra.mxu0 0.0
        %474 = vmatprep.subr.mxu0 0.0
        %475 = vmatpush2.msra.mxu0 0.0
        %476 = vmatprep.subr.mxu0 0.0
        %477 = vmatpush2.msra.mxu0 0.0
        %478 = vmatprep.subr.mxu0 0.0
        %479 = vmatpush2.msra.mxu0 0.0
        %480 = vmatprep.subr.mxu0 0.0
        %481 = vmatpush2.msra.mxu0 0.0
        %482 = vmatprep.mubr.f32.mxu0 0.0
        %483 = vmatmul.mubr.f32.gmra.mxu0 %v395
        %v484 = vpop.f32.mrf.mxu0
        %v485 = vadd.f32 0.0, %v484
        %v486 = vpop.f32.mrf.mxu0
        %487 = vmatprep.mubr.f32.mxu0 0.0
        %488 = vmatmul.mubr.f32.gmra.mxu0 %v398
        %v489 = vpop.f32.mrf.mxu0
        %v490 = vadd.f32 0.0, %v489
        %v491 = vpop.f32.mrf.mxu0
        %492 = vmatprep.mubr.f32.mxu0 0.0
        %493 = vmatmul.mubr.f32.gmra.mxu0 %v401
        %v494 = vpop.f32.mrf.mxu0
        %v495 = vadd.f32 0.0, %v494
        %v496 = vpop.f32.mrf.mxu0
        %497 = vmatprep.mubr.f32.mxu0 0.0
        %498 = vmatmul.mubr.f32.gmra.mxu0 %v404
        %v499 = vpop.f32.mrf.mxu0
        %v500 = vadd.f32 0.0, %v499
        %v501 = vpop.f32.mrf.mxu0
        %502 = vmatprep.mubr.f32.mxu0 0.0
        %503 = vmatmul.mubr.f32.gmra.mxu0 %v407
        %v504 = vpop.f32.mrf.mxu0
        %v505 = vadd.f32 0.0, %v504
        %v506 = vpop.f32.mrf.mxu0
        %507 = vmatprep.mubr.f32.mxu0 0.0
        %508 = vmatmul.mubr.f32.gmra.mxu0 %v410
        %v509 = vpop.f32.mrf.mxu0
        %v510 = vadd.f32 0.0, %v509
        %v511 = vpop.f32.mrf.mxu0
        %512 = vmatprep.mubr.f32.mxu0 0.0
        %513 = vmatmul.mubr.f32.gmra.mxu0 %v413
        %v514 = vpop.f32.mrf.mxu0
        %v515 = vadd.f32 0.0, %v514
        %v516 = vpop.f32.mrf.mxu0
        %517 = vmatprep.mubr.f32.mxu0 0.0
        %518 = vmatmul.mubr.f32.gmra.mxu0 %v416
        %v519 = vpop.f32.mrf.mxu0
        %v520 = vadd.f32 0.0, %v519
        %v521 = vpop.f32.mrf.mxu0
        %522 = vdwg.mxu0
        %523 = vst.msk [vmem:[%s237] sm:$0xff] %vm256, %v485
        %524 = vst.msk [vmem:[%s237 + $0x8] sm:$0xff] %vm256, %v490
        %525 = vst.msk [vmem:[%s237 + $0x10] sm:$0xff] %vm256, %v495
        %526 = vst.msk [vmem:[%s237 + $0x18] sm:$0xff] %vm256, %v500
        %527 = vst.msk [vmem:[%s237 + $0x20] sm:$0xff] %vm256, %v505
        %528 = vst.msk [vmem:[%s237 + $0x28] sm:$0xff] %vm256, %v510
        %529 = vst.msk [vmem:[%s237 + $0x30] sm:$0xff] %vm256, %v515
        %530 = vst.msk [vmem:[%s237 + $0x38] sm:$0xff] %vm256, %v520
        %s531 = scalar_lea.vmem %s215, 64 [#allocation7]
        %v532 = vld [vmem:[%s531] sm:$0xff]
        %v533 = vld [vmem:[%s531 + $0x8] sm:$0xff]
        %v534 = vld [vmem:[%s531 + $0x10] sm:$0xff]
        %v535 = vld [vmem:[%s531 + $0x18] sm:$0xff]
        %v536 = vld [vmem:[%s531 + $0x20] sm:$0xff]
        %v537 = vld [vmem:[%s531 + $0x28] sm:$0xff]
        %v538 = vld [vmem:[%s531 + $0x30] sm:$0xff]
        %v539 = vld [vmem:[%s531 + $0x38] sm:$0xff]
        %v540 = vld [vmem:[#allocation2] sm:$0xff]
        %v541 = vld [vmem:[#allocation2 + $0x8] sm:$0xff]
        %v542 = vld [vmem:[#allocation2 + $0x10] sm:$0xff]
        %v543 = vld [vmem:[#allocation2 + $0x18] sm:$0xff]
        %v544 = vld [vmem:[#allocation2 + $0x20] sm:$0xff]
        %v545 = vld [vmem:[#allocation2 + $0x28] sm:$0xff]
        %v546 = vld [vmem:[#allocation2 + $0x30] sm:$0xff]
        %v547 = vld [vmem:[#allocation2 + $0x38] sm:$0xff]
        %v549 = vsel %vm256, %v540, 0
        %v552 = vsel %vm256, %v541, 0
        %v555 = vsel %vm256, %v542, 0
        %v558 = vsel %vm256, %v543, 0
        %v561 = vsel %vm256, %v544, 0
        %v564 = vsel %vm256, %v545, 0
        %v567 = vsel %vm256, %v546, 0
        %v570 = vsel %vm256, %v547, 0
        %572 = vmatprep.subr.mxu0 0.0
        %573 = vmatpush1.msra.mxu0 0.0
        %574 = vmatprep.subr.mxu0 0.0
        %575 = vmatpush1.msra.mxu0 0.0
        %576 = vmatprep.subr.mxu0 0.0
        %577 = vmatpush1.msra.mxu0 0.0
        %578 = vmatprep.subr.mxu0 0.0
        %579 = vmatpush1.msra.mxu0 0.0
        %580 = vmatprep.subr.mxu0 0.0
        %581 = vmatpush1.msra.mxu0 0.0
        %582 = vmatprep.subr.mxu0 0.0
        %583 = vmatpush1.msra.mxu0 0.0
        %584 = vmatprep.subr.mxu0 0.0
        %585 = vmatpush1.msra.mxu0 0.0
        %586 = vmatprep.subr.mxu0 0.0
        %587 = vmatpush1.msra.mxu0 0.0
        %588 = vmatprep.subr.mxu0 0.0
        %589 = vmatpush1.msra.mxu0 %v539
        %590 = vmatprep.subr.mxu0 0.0
        %591 = vmatpush1.msra.mxu0 %v538
        %592 = vmatprep.subr.mxu0 0.0
        %593 = vmatpush1.msra.mxu0 %v537
        %594 = vmatprep.subr.mxu0 0.0
        %595 = vmatpush1.msra.mxu0 %v536
        %596 = vmatprep.subr.mxu0 0.0
        %597 = vmatpush1.msra.mxu0 %v535
        %598 = vmatprep.subr.mxu0 0.0
        %599 = vmatpush1.msra.mxu0 %v534
        %600 = vmatprep.subr.mxu0 0.0
        %601 = vmatpush1.msra.mxu0 %v533
        %602 = vmatprep.subr.mxu0 0.0
        %603 = vmatpush1.msra.mxu0 %v532
        %604 = vmatprep.subr.mxu0 0.0
        %605 = vmatpush2.msra.mxu0 0.0
        %606 = vmatprep.subr.mxu0 0.0
        %607 = vmatpush2.msra.mxu0 0.0
        %608 = vmatprep.subr.mxu0 0.0
        %609 = vmatpush2.msra.mxu0 0.0
        %610 = vmatprep.subr.mxu0 0.0
        %611 = vmatpush2.msra.mxu0 0.0
        %612 = vmatprep.subr.mxu0 0.0
        %613 = vmatpush2.msra.mxu0 0.0
        %614 = vmatprep.subr.mxu0 0.0
        %615 = vmatpush2.msra.mxu0 0.0
        %616 = vmatprep.subr.mxu0 0.0
        %617 = vmatpush2.msra.mxu0 0.0
        %618 = vmatprep.subr.mxu0 0.0
        %619 = vmatpush2.msra.mxu0 0.0
        %620 = vmatprep.subr.mxu0 0.0
        %621 = vmatpush2.msra.mxu0 0.0
        %622 = vmatprep.subr.mxu0 0.0
        %623 = vmatpush2.msra.mxu0 0.0
        %624 = vmatprep.subr.mxu0 0.0
        %625 = vmatpush2.msra.mxu0 0.0
        %626 = vmatprep.subr.mxu0 0.0
        %627 = vmatpush2.msra.mxu0 0.0
        %628 = vmatprep.subr.mxu0 0.0
        %629 = vmatpush2.msra.mxu0 0.0
        %630 = vmatprep.subr.mxu0 0.0
        %631 = vmatpush2.msra.mxu0 0.0
        %632 = vmatprep.subr.mxu0 0.0
        %633 = vmatpush2.msra.mxu0 0.0
        %634 = vmatprep.subr.mxu0 0.0
        %635 = vmatpush2.msra.mxu0 0.0
        %636 = vmatprep.mubr.f32.mxu0 0.0
        %637 = vmatmul.mubr.f32.gmra.mxu0 %v549
        %v638 = vpop.f32.mrf.mxu0
        %v639 = vadd.f32 0.0, %v638
        %v640 = vpop.f32.mrf.mxu0
        %641 = vmatprep.mubr.f32.mxu0 0.0
        %642 = vmatmul.mubr.f32.gmra.mxu0 %v552
        %v643 = vpop.f32.mrf.mxu0
        %v644 = vadd.f32 0.0, %v643
        %v645 = vpop.f32.mrf.mxu0
        %646 = vmatprep.mubr.f32.mxu0 0.0
        %647 = vmatmul.mubr.f32.gmra.mxu0 %v555
        %v648 = vpop.f32.mrf.mxu0
        %v649 = vadd.f32 0.0, %v648
        %v650 = vpop.f32.mrf.mxu0
        %651 = vmatprep.mubr.f32.mxu0 0.0
        %652 = vmatmul.mubr.f32.gmra.mxu0 %v558
        %v653 = vpop.f32.mrf.mxu0
        %v654 = vadd.f32 0.0, %v653
        %v655 = vpop.f32.mrf.mxu0
        %656 = vmatprep.mubr.f32.mxu0 0.0
        %657 = vmatmul.mubr.f32.gmra.mxu0 %v561
        %v658 = vpop.f32.mrf.mxu0
        %v659 = vadd.f32 0.0, %v658
        %v660 = vpop.f32.mrf.mxu0
        %661 = vmatprep.mubr.f32.mxu0 0.0
        %662 = vmatmul.mubr.f32.gmra.mxu0 %v564
        %v663 = vpop.f32.mrf.mxu0
        %v664 = vadd.f32 0.0, %v663
        %v665 = vpop.f32.mrf.mxu0
        %666 = vmatprep.mubr.f32.mxu0 0.0
        %667 = vmatmul.mubr.f32.gmra.mxu0 %v567
        %v668 = vpop.f32.mrf.mxu0
        %v669 = vadd.f32 0.0, %v668
        %v670 = vpop.f32.mrf.mxu0
        %671 = vmatprep.mubr.f32.mxu0 0.0
        %672 = vmatmul.mubr.f32.gmra.mxu0 %v570
        %v673 = vpop.f32.mrf.mxu0
        %v674 = vadd.f32 0.0, %v673
        %v675 = vpop.f32.mrf.mxu0
        %676 = vdwg.mxu0
        %v677 = vld [vmem:[#allocation5] sm:$0xff]
        %v678 = vld [vmem:[#allocation5 + $0x8] sm:$0xff]
        %v679 = vld [vmem:[#allocation5 + $0x10] sm:$0xff]
        %v680 = vld [vmem:[#allocation5 + $0x18] sm:$0xff]
        %v681 = vld [vmem:[#allocation5 + $0x20] sm:$0xff]
        %v682 = vld [vmem:[#allocation5 + $0x28] sm:$0xff]
        %v683 = vld [vmem:[#allocation5 + $0x30] sm:$0xff]
        %v684 = vld [vmem:[#allocation5 + $0x38] sm:$0xff]
        %v686 = vsel %vm256, %v639, 0
        %v689 = vsel %vm256, %v644, 0
        %v692 = vsel %vm256, %v649, 0
        %v695 = vsel %vm256, %v654, 0
        %v698 = vsel %vm256, %v659, 0
        %v701 = vsel %vm256, %v664, 0
        %v704 = vsel %vm256, %v669, 0
        %v707 = vsel %vm256, %v674, 0
        %709 = vmatprep.subr.mxu0 0.0
        %710 = vmatpush1.msra.mxu0 0.0
        %711 = vmatprep.subr.mxu0 0.0
        %712 = vmatpush1.msra.mxu0 0.0
        %713 = vmatprep.subr.mxu0 0.0
        %714 = vmatpush1.msra.mxu0 0.0
        %715 = vmatprep.subr.mxu0 0.0
        %716 = vmatpush1.msra.mxu0 0.0
        %717 = vmatprep.subr.mxu0 0.0
        %718 = vmatpush1.msra.mxu0 0.0
        %719 = vmatprep.subr.mxu0 0.0
        %720 = vmatpush1.msra.mxu0 0.0
        %721 = vmatprep.subr.mxu0 0.0
        %722 = vmatpush1.msra.mxu0 0.0
        %723 = vmatprep.subr.mxu0 0.0
        %724 = vmatpush1.msra.mxu0 0.0
        %725 = vmatprep.subr.mxu0 0.0
        %726 = vmatpush1.msra.mxu0 %v684
        %727 = vmatprep.subr.mxu0 0.0
        %728 = vmatpush1.msra.mxu0 %v683
        %729 = vmatprep.subr.mxu0 0.0
        %730 = vmatpush1.msra.mxu0 %v682
        %731 = vmatprep.subr.mxu0 0.0
        %732 = vmatpush1.msra.mxu0 %v681
        %733 = vmatprep.subr.mxu0 0.0
        %734 = vmatpush1.msra.mxu0 %v680
        %735 = vmatprep.subr.mxu0 0.0
        %736 = vmatpush1.msra.mxu0 %v679
        %737 = vmatprep.subr.mxu0 0.0
        %738 = vmatpush1.msra.mxu0 %v678
        %739 = vmatprep.subr.mxu0 0.0
        %740 = vmatpush1.msra.mxu0 %v677
        %741 = vmatprep.subr.mxu0 0.0
        %742 = vmatpush2.msra.mxu0 0.0
        %743 = vmatprep.subr.mxu0 0.0
        %744 = vmatpush2.msra.mxu0 0.0
        %745 = vmatprep.subr.mxu0 0.0
        %746 = vmatpush2.msra.mxu0 0.0
        %747 = vmatprep.subr.mxu0 0.0
        %748 = vmatpush2.msra.mxu0 0.0
        %749 = vmatprep.subr.mxu0 0.0
        %750 = vmatpush2.msra.mxu0 0.0
        %751 = vmatprep.subr.mxu0 0.0
        %752 = vmatpush2.msra.mxu0 0.0
        %753 = vmatprep.subr.mxu0 0.0
        %754 = vmatpush2.msra.mxu0 0.0
        %755 = vmatprep.subr.mxu0 0.0
        %756 = vmatpush2.msra.mxu0 0.0
        %757 = vmatprep.subr.mxu0 0.0
        %758 = vmatpush2.msra.mxu0 0.0
        %759 = vmatprep.subr.mxu0 0.0
        %760 = vmatpush2.msra.mxu0 0.0
        %761 = vmatprep.subr.mxu0 0.0
        %762 = vmatpush2.msra.mxu0 0.0
        %763 = vmatprep.subr.mxu0 0.0
        %764 = vmatpush2.msra.mxu0 0.0
        %765 = vmatprep.subr.mxu0 0.0
        %766 = vmatpush2.msra.mxu0 0.0
        %767 = vmatprep.subr.mxu0 0.0
        %768 = vmatpush2.msra.mxu0 0.0
        %769 = vmatprep.subr.mxu0 0.0
        %770 = vmatpush2.msra.mxu0 0.0
        %771 = vmatprep.subr.mxu0 0.0
        %772 = vmatpush2.msra.mxu0 0.0
        %773 = vmatprep.mubr.f32.mxu0 0.0
        %774 = vmatmul.mubr.f32.gmra.mxu0 %v686
        %v775 = vpop.f32.mrf.mxu0
        %v776 = vadd.f32 0.0, %v775
        %v777 = vpop.f32.mrf.mxu0
        %778 = vmatprep.mubr.f32.mxu0 0.0
        %779 = vmatmul.mubr.f32.gmra.mxu0 %v689
        %v780 = vpop.f32.mrf.mxu0
        %v781 = vadd.f32 0.0, %v780
        %v782 = vpop.f32.mrf.mxu0
        %783 = vmatprep.mubr.f32.mxu0 0.0
        %784 = vmatmul.mubr.f32.gmra.mxu0 %v692
        %v785 = vpop.f32.mrf.mxu0
        %v786 = vadd.f32 0.0, %v785
        %v787 = vpop.f32.mrf.mxu0
        %788 = vmatprep.mubr.f32.mxu0 0.0
        %789 = vmatmul.mubr.f32.gmra.mxu0 %v695
        %v790 = vpop.f32.mrf.mxu0
        %v791 = vadd.f32 0.0, %v790
        %v792 = vpop.f32.mrf.mxu0
        %793 = vmatprep.mubr.f32.mxu0 0.0
        %794 = vmatmul.mubr.f32.gmra.mxu0 %v698
        %v795 = vpop.f32.mrf.mxu0
        %v796 = vadd.f32 0.0, %v795
        %v797 = vpop.f32.mrf.mxu0
        %798 = vmatprep.mubr.f32.mxu0 0.0
        %799 = vmatmul.mubr.f32.gmra.mxu0 %v701
        %v800 = vpop.f32.mrf.mxu0
        %v801 = vadd.f32 0.0, %v800
        %v802 = vpop.f32.mrf.mxu0
        %803 = vmatprep.mubr.f32.mxu0 0.0
        %804 = vmatmul.mubr.f32.gmra.mxu0 %v704
        %v805 = vpop.f32.mrf.mxu0
        %v806 = vadd.f32 0.0, %v805
        %v807 = vpop.f32.mrf.mxu0
        %808 = vmatprep.mubr.f32.mxu0 0.0
        %809 = vmatmul.mubr.f32.gmra.mxu0 %v707
        %v810 = vpop.f32.mrf.mxu0
        %v811 = vadd.f32 0.0, %v810
        %v812 = vpop.f32.mrf.mxu0
        %813 = vdwg.mxu0
        %s814 = scalar_lea.vmem %s237, 64 [#allocation8]
        %815 = vst.msk [vmem:[%s814] sm:$0xff] %vm256, %v776
        %816 = vst.msk [vmem:[%s814 + $0x8] sm:$0xff] %vm256, %v781
        %817 = vst.msk [vmem:[%s814 + $0x10] sm:$0xff] %vm256, %v786
        %818 = vst.msk [vmem:[%s814 + $0x18] sm:$0xff] %vm256, %v791
        %819 = vst.msk [vmem:[%s814 + $0x20] sm:$0xff] %vm256, %v796
        %820 = vst.msk [vmem:[%s814 + $0x28] sm:$0xff] %vm256, %v801
        %821 = vst.msk [vmem:[%s814 + $0x30] sm:$0xff] %vm256, %v806
        %822 = vst.msk [vmem:[%s814 + $0x38] sm:$0xff] %vm256, %v811
        %s823 = scalar_lea.vmem %s215, 128 [#allocation7]
        %v824 = vld [vmem:[%s823] sm:$0xff]
        %v825 = vld [vmem:[%s823 + $0x8] sm:$0xff]
        %v826 = vld [vmem:[%s823 + $0x10] sm:$0xff]
        %v827 = vld [vmem:[%s823 + $0x18] sm:$0xff]
        %v828 = vld [vmem:[%s823 + $0x20] sm:$0xff]
        %v829 = vld [vmem:[%s823 + $0x28] sm:$0xff]
        %v830 = vld [vmem:[%s823 + $0x30] sm:$0xff]
        %v831 = vld [vmem:[%s823 + $0x38] sm:$0xff]
        %v832 = vld [vmem:[#allocation2] sm:$0xff]
        %v833 = vld [vmem:[#allocation2 + $0x8] sm:$0xff]
        %v834 = vld [vmem:[#allocation2 + $0x10] sm:$0xff]
        %v835 = vld [vmem:[#allocation2 + $0x18] sm:$0xff]
        %v836 = vld [vmem:[#allocation2 + $0x20] sm:$0xff]
        %v837 = vld [vmem:[#allocation2 + $0x28] sm:$0xff]
        %v838 = vld [vmem:[#allocation2 + $0x30] sm:$0xff]
        %v839 = vld [vmem:[#allocation2 + $0x38] sm:$0xff]
        %v841 = vsel %vm256, %v832, 0
        %v844 = vsel %vm256, %v833, 0
        %v847 = vsel %vm256, %v834, 0
        %v850 = vsel %vm256, %v835, 0
        %v853 = vsel %vm256, %v836, 0
        %v856 = vsel %vm256, %v837, 0
        %v859 = vsel %vm256, %v838, 0
        %v862 = vsel %vm256, %v839, 0
        %864 = vmatprep.subr.mxu0 0.0
        %865 = vmatpush1.msra.mxu0 0.0
        %866 = vmatprep.subr.mxu0 0.0
        %867 = vmatpush1.msra.mxu0 0.0
        %868 = vmatprep.subr.mxu0 0.0
        %869 = vmatpush1.msra.mxu0 0.0
        %870 = vmatprep.subr.mxu0 0.0
        %871 = vmatpush1.msra.mxu0 0.0
        %872 = vmatprep.subr.mxu0 0.0
        %873 = vmatpush1.msra.mxu0 0.0
        %874 = vmatprep.subr.mxu0 0.0
        %875 = vmatpush1.msra.mxu0 0.0
        %876 = vmatprep.subr.mxu0 0.0
        %877 = vmatpush1.msra.mxu0 0.0
        %878 = vmatprep.subr.mxu0 0.0
        %879 = vmatpush1.msra.mxu0 0.0
        %880 = vmatprep.subr.mxu0 0.0
        %881 = vmatpush1.msra.mxu0 %v831
        %882 = vmatprep.subr.mxu0 0.0
        %883 = vmatpush1.msra.mxu0 %v830
        %884 = vmatprep.subr.mxu0 0.0
        %885 = vmatpush1.msra.mxu0 %v829
        %886 = vmatprep.subr.mxu0 0.0
        %887 = vmatpush1.msra.mxu0 %v828
        %888 = vmatprep.subr.mxu0 0.0
        %889 = vmatpush1.msra.mxu0 %v827
        %890 = vmatprep.subr.mxu0 0.0
        %891 = vmatpush1.msra.mxu0 %v826
        %892 = vmatprep.subr.mxu0 0.0
        %893 = vmatpush1.msra.mxu0 %v825
        %894 = vmatprep.subr.mxu0 0.0
        %895 = vmatpush1.msra.mxu0 %v824
        %896 = vmatprep.subr.mxu0 0.0
        %897 = vmatpush2.msra.mxu0 0.0
        %898 = vmatprep.subr.mxu0 0.0
        %899 = vmatpush2.msra.mxu0 0.0
        %900 = vmatprep.subr.mxu0 0.0
        %901 = vmatpush2.msra.mxu0 0.0
        %902 = vmatprep.subr.mxu0 0.0
        %903 = vmatpush2.msra.mxu0 0.0
        %904 = vmatprep.subr.mxu0 0.0
        %905 = vmatpush2.msra.mxu0 0.0
        %906 = vmatprep.subr.mxu0 0.0
        %907 = vmatpush2.msra.mxu0 0.0
        %908 = vmatprep.subr.mxu0 0.0
        %909 = vmatpush2.msra.mxu0 0.0
        %910 = vmatprep.subr.mxu0 0.0
        %911 = vmatpush2.msra.mxu0 0.0
        %912 = vmatprep.subr.mxu0 0.0
        %913 = vmatpush2.msra.mxu0 0.0
        %914 = vmatprep.subr.mxu0 0.0
        %915 = vmatpush2.msra.mxu0 0.0
        %916 = vmatprep.subr.mxu0 0.0
        %917 = vmatpush2.msra.mxu0 0.0
        %918 = vmatprep.subr.mxu0 0.0
        %919 = vmatpush2.msra.mxu0 0.0
        %920 = vmatprep.subr.mxu0 0.0
        %921 = vmatpush2.msra.mxu0 0.0
        %922 = vmatprep.subr.mxu0 0.0
        %923 = vmatpush2.msra.mxu0 0.0
        %924 = vmatprep.subr.mxu0 0.0
        %925 = vmatpush2.msra.mxu0 0.0
        %926 = vmatprep.subr.mxu0 0.0
        %927 = vmatpush2.msra.mxu0 0.0
        %928 = vmatprep.mubr.f32.mxu0 0.0
        %929 = vmatmul.mubr.f32.gmra.mxu0 %v841
        %v930 = vpop.f32.mrf.mxu0
        %v931 = vadd.f32 0.0, %v930
        %v932 = vpop.f32.mrf.mxu0
        %933 = vmatprep.mubr.f32.mxu0 0.0
        %934 = vmatmul.mubr.f32.gmra.mxu0 %v844
        %v935 = vpop.f32.mrf.mxu0
        %v936 = vadd.f32 0.0, %v935
        %v937 = vpop.f32.mrf.mxu0
        %938 = vmatprep.mubr.f32.mxu0 0.0
        %939 = vmatmul.mubr.f32.gmra.mxu0 %v847
        %v940 = vpop.f32.mrf.mxu0
        %v941 = vadd.f32 0.0, %v940
        %v942 = vpop.f32.mrf.mxu0
        %943 = vmatprep.mubr.f32.mxu0 0.0
        %944 = vmatmul.mubr.f32.gmra.mxu0 %v850
        %v945 = vpop.f32.mrf.mxu0
        %v946 = vadd.f32 0.0, %v945
        %v947 = vpop.f32.mrf.mxu0
        %948 = vmatprep.mubr.f32.mxu0 0.0
        %949 = vmatmul.mubr.f32.gmra.mxu0 %v853
        %v950 = vpop.f32.mrf.mxu0
        %v951 = vadd.f32 0.0, %v950
        %v952 = vpop.f32.mrf.mxu0
        %953 = vmatprep.mubr.f32.mxu0 0.0
        %954 = vmatmul.mubr.f32.gmra.mxu0 %v856
        %v955 = vpop.f32.mrf.mxu0
        %v956 = vadd.f32 0.0, %v955
        %v957 = vpop.f32.mrf.mxu0
        %958 = vmatprep.mubr.f32.mxu0 0.0
        %959 = vmatmul.mubr.f32.gmra.mxu0 %v859
        %v960 = vpop.f32.mrf.mxu0
        %v961 = vadd.f32 0.0, %v960
        %v962 = vpop.f32.mrf.mxu0
        %963 = vmatprep.mubr.f32.mxu0 0.0
        %964 = vmatmul.mubr.f32.gmra.mxu0 %v862
        %v965 = vpop.f32.mrf.mxu0
        %v966 = vadd.f32 0.0, %v965
        %v967 = vpop.f32.mrf.mxu0
        %968 = vdwg.mxu0
        %v969 = vld [vmem:[#allocation5] sm:$0xff]
        %v970 = vld [vmem:[#allocation5 + $0x8] sm:$0xff]
        %v971 = vld [vmem:[#allocation5 + $0x10] sm:$0xff]
        %v972 = vld [vmem:[#allocation5 + $0x18] sm:$0xff]
        %v973 = vld [vmem:[#allocation5 + $0x20] sm:$0xff]
        %v974 = vld [vmem:[#allocation5 + $0x28] sm:$0xff]
        %v975 = vld [vmem:[#allocation5 + $0x30] sm:$0xff]
        %v976 = vld [vmem:[#allocation5 + $0x38] sm:$0xff]
        %v978 = vsel %vm256, %v931, 0
        %v981 = vsel %vm256, %v936, 0
        %v984 = vsel %vm256, %v941, 0
        %v987 = vsel %vm256, %v946, 0
        %v990 = vsel %vm256, %v951, 0
        %v993 = vsel %vm256, %v956, 0
        %v996 = vsel %vm256, %v961, 0
        %v999 = vsel %vm256, %v966, 0
        %1001 = vmatprep.subr.mxu0 0.0
        %1002 = vmatpush1.msra.mxu0 0.0
        %1003 = vmatprep.subr.mxu0 0.0
        %1004 = vmatpush1.msra.mxu0 0.0
        %1005 = vmatprep.subr.mxu0 0.0
        %1006 = vmatpush1.msra.mxu0 0.0
        %1007 = vmatprep.subr.mxu0 0.0
        %1008 = vmatpush1.msra.mxu0 0.0
        %1009 = vmatprep.subr.mxu0 0.0
        %1010 = vmatpush1.msra.mxu0 0.0
        %1011 = vmatprep.subr.mxu0 0.0
        %1012 = vmatpush1.msra.mxu0 0.0
        %1013 = vmatprep.subr.mxu0 0.0
        %1014 = vmatpush1.msra.mxu0 0.0
        %1015 = vmatprep.subr.mxu0 0.0
        %1016 = vmatpush1.msra.mxu0 0.0
        %1017 = vmatprep.subr.mxu0 0.0
        %1018 = vmatpush1.msra.mxu0 %v976
        %1019 = vmatprep.subr.mxu0 0.0
        %1020 = vmatpush1.msra.mxu0 %v975
        %1021 = vmatprep.subr.mxu0 0.0
        %1022 = vmatpush1.msra.mxu0 %v974
        %1023 = vmatprep.subr.mxu0 0.0
        %1024 = vmatpush1.msra.mxu0 %v973
        %1025 = vmatprep.subr.mxu0 0.0
        %1026 = vmatpush1.msra.mxu0 %v972
        %1027 = vmatprep.subr.mxu0 0.0
        %1028 = vmatpush1.msra.mxu0 %v971
        %1029 = vmatprep.subr.mxu0 0.0
        %1030 = vmatpush1.msra.mxu0 %v970
        %1031 = vmatprep.subr.mxu0 0.0
        %1032 = vmatpush1.msra.mxu0 %v969
        %1033 = vmatprep.subr.mxu0 0.0
        %1034 = vmatpush2.msra.mxu0 0.0
        %1035 = vmatprep.subr.mxu0 0.0
        %1036 = vmatpush2.msra.mxu0 0.0
        %1037 = vmatprep.subr.mxu0 0.0
        %1038 = vmatpush2.msra.mxu0 0.0
        %1039 = vmatprep.subr.mxu0 0.0
        %1040 = vmatpush2.msra.mxu0 0.0
        %1041 = vmatprep.subr.mxu0 0.0
        %1042 = vmatpush2.msra.mxu0 0.0
        %1043 = vmatprep.subr.mxu0 0.0
        %1044 = vmatpush2.msra.mxu0 0.0
        %1045 = vmatprep.subr.mxu0 0.0
        %1046 = vmatpush2.msra.mxu0 0.0
        %1047 = vmatprep.subr.mxu0 0.0
        %1048 = vmatpush2.msra.mxu0 0.0
        %1049 = vmatprep.subr.mxu0 0.0
        %1050 = vmatpush2.msra.mxu0 0.0
        %1051 = vmatprep.subr.mxu0 0.0
        %1052 = vmatpush2.msra.mxu0 0.0
        %1053 = vmatprep.subr.mxu0 0.0
        %1054 = vmatpush2.msra.mxu0 0.0
        %1055 = vmatprep.subr.mxu0 0.0
        %1056 = vmatpush2.msra.mxu0 0.0
        %1057 = vmatprep.subr.mxu0 0.0
        %1058 = vmatpush2.msra.mxu0 0.0
        %1059 = vmatprep.subr.mxu0 0.0
        %1060 = vmatpush2.msra.mxu0 0.0
        %1061 = vmatprep.subr.mxu0 0.0
        %1062 = vmatpush2.msra.mxu0 0.0
        %1063 = vmatprep.subr.mxu0 0.0
        %1064 = vmatpush2.msra.mxu0 0.0
        %1065 = vmatprep.mubr.f32.mxu0 0.0
        %1066 = vmatmul.mubr.f32.gmra.mxu0 %v978
        %v1067 = vpop.f32.mrf.mxu0
        %v1068 = vadd.f32 0.0, %v1067
        %v1069 = vpop.f32.mrf.mxu0
        %1070 = vmatprep.mubr.f32.mxu0 0.0
        %1071 = vmatmul.mubr.f32.gmra.mxu0 %v981
        %v1072 = vpop.f32.mrf.mxu0
        %v1073 = vadd.f32 0.0, %v1072
        %v1074 = vpop.f32.mrf.mxu0
        %1075 = vmatprep.mubr.f32.mxu0 0.0
        %1076 = vmatmul.mubr.f32.gmra.mxu0 %v984
        %v1077 = vpop.f32.mrf.mxu0
        %v1078 = vadd.f32 0.0, %v1077
        %v1079 = vpop.f32.mrf.mxu0
        %1080 = vmatprep.mubr.f32.mxu0 0.0
        %1081 = vmatmul.mubr.f32.gmra.mxu0 %v987
        %v1082 = vpop.f32.mrf.mxu0
        %v1083 = vadd.f32 0.0, %v1082
        %v1084 = vpop.f32.mrf.mxu0
        %1085 = vmatprep.mubr.f32.mxu0 0.0
        %1086 = vmatmul.mubr.f32.gmra.mxu0 %v990
        %v1087 = vpop.f32.mrf.mxu0
        %v1088 = vadd.f32 0.0, %v1087
        %v1089 = vpop.f32.mrf.mxu0
        %1090 = vmatprep.mubr.f32.mxu0 0.0
        %1091 = vmatmul.mubr.f32.gmra.mxu0 %v993
        %v1092 = vpop.f32.mrf.mxu0
        %v1093 = vadd.f32 0.0, %v1092
        %v1094 = vpop.f32.mrf.mxu0
        %1095 = vmatprep.mubr.f32.mxu0 0.0
        %1096 = vmatmul.mubr.f32.gmra.mxu0 %v996
        %v1097 = vpop.f32.mrf.mxu0
        %v1098 = vadd.f32 0.0, %v1097
        %v1099 = vpop.f32.mrf.mxu0
        %1100 = vmatprep.mubr.f32.mxu0 0.0
        %1101 = vmatmul.mubr.f32.gmra.mxu0 %v999
        %v1102 = vpop.f32.mrf.mxu0
        %v1103 = vadd.f32 0.0, %v1102
        %v1104 = vpop.f32.mrf.mxu0
        %1105 = vdwg.mxu0
        %s1106 = scalar_lea.vmem %s237, 128 [#allocation8]
        %1107 = vst.msk [vmem:[%s1106] sm:$0xff] %vm256, %v1068
        %1108 = vst.msk [vmem:[%s1106 + $0x8] sm:$0xff] %vm256, %v1073
        %1109 = vst.msk [vmem:[%s1106 + $0x10] sm:$0xff] %vm256, %v1078
        %1110 = vst.msk [vmem:[%s1106 + $0x18] sm:$0xff] %vm256, %v1083
        %1111 = vst.msk [vmem:[%s1106 + $0x20] sm:$0xff] %vm256, %v1088
        %1112 = vst.msk [vmem:[%s1106 + $0x28] sm:$0xff] %vm256, %v1093
        %1113 = vst.msk [vmem:[%s1106 + $0x30] sm:$0xff] %vm256, %v1098
        %1114 = vst.msk [vmem:[%s1106 + $0x38] sm:$0xff] %vm256, %v1103
        %s1115 = sand.u32 %s114, 1
        %s1116 = scalar_lea.sflag [#allocation4], %s1115
        %s1117 = sand.u32 %s114, 1
        %s1118 = smul.addr %s1117, 192
        %s1119 = scalar_lea.vmem [#allocation8], %s1118
        // Predicated region
        $region45: #{tpu_custom_call.1} parent=31 // pred_check
          %p1120 = pneg %p124
        $region46: #{tpu_custom_call.1} parent=31 // pred_check_branch
          %1122 = sbr.rel (%p1120) target = $region48
        $region47: #{tpu_custom_call.1} parent=31 // pred_region
          %s1123 = smul.u32 8, %s24
          %s1125 = ssub.s32 3072, 3072
          %1126 = vsyncadd %s1116, %s1125
          %s1127 = smul.addr %s23, 24
          %s1128 = sadd.s32 %s1123, %s1127
          %s1129 = smul.addr %s1128, 128
          %s1130 = scalar_lea.hbm %s3, %s1129
          %s1131 = sshll.u32 %s1119, 4
          %s1132 = int_to_ptr.vmem [resolvable:$true] %s1131
          %1137 = dma.vmem_to_hbm [thread:$0]  %s1132, 3072, %s1130, %s1116, 128, 128, 8
        $region48: #{tpu_custom_call.1} parent=31 // pred_fallthru
          _
      $region32: #{tpu_custom_call.1} parent=5 // pred_fallthru
        _
      %p1138 = scmp.le.s32.totalorder 2, %s14
      // Predicated region
      $region49: #{tpu_custom_call.1} parent=5 // pred_check
        %p1139 = pneg %p1138
      $region50: #{tpu_custom_call.1} parent=5 // pred_check_branch
        %1141 = sbr.rel (%p1139) target = $region52
      $region51: #{tpu_custom_call.1} parent=5 // pred_region
        %s1142 = ssub.s32 %s14, 2
        // Predicated region
        $region53: #{tpu_custom_call.1} parent=51 // pred_check
          %p1143 = pneg %p130
        $region54: #{tpu_custom_call.1} parent=51 // pred_check_branch
          %1145 = sbr.rel (%p1143) target = $region56
        $region55: #{tpu_custom_call.1} parent=51 // pred_region
          %s1146 = sand.u32 %s115, 1
          %s1147 = scalar_lea.sflag [#allocation4], %s1146
          %s1148 = sand.u32 %s115, 1
          %s1149 = smul.addr %s1148, 192
          %s1150 = scalar_lea.vmem [#allocation8], %s1149
          %1151 = dma.done %s1147, 3072
        $region56: #{tpu_custom_call.1} parent=51 // pred_fallthru
          _
      $region52: #{tpu_custom_call.1} parent=5 // pred_fallthru
        _
    $region6: #{tpu_custom_call.1} parent=1 // loop_footer
      %s18 = sadd.s32 1, %s14
    $region7: #{tpu_custom_call.1} parent=1 // loop_footer_branch
      %13 = sbr.rel target = $region3
    $region8: #{tpu_custom_call.1} parent=1 // loop_exit
      _
    %1152 = vsyncpa [#allocation3], 1
    %s1153 = scalar_lea.sflag [#allocation3], 1
    %1154 = vsyncpa %s1153, 1
    %1155 = vsyncpa [#allocation6], 1
    %1156 = vsyncpa [#allocation4], 1
    %s1157 = scalar_lea.sflag [#allocation4], 1
    %1158 = vsyncpa %s1157, 1

</llo_original>
